<compile_context>
chip_gen: v7x
topology: tpu7x:2x2x1
jax: 0.10.0
libtpu: 0.0.40
codegen_flags: <defaults>
</compile_context>

<pallas_src>
import math

import jax
import jax.numpy as jnp
from jax import lax
from jax.experimental import pallas as pl
from jax.experimental.pallas import tpu as pltpu

_ACC_ROWS = 32                     # accumulator rows (multiple of every packing factor)
_LANE_CHOICES = (512, 256, 128)    # lane-dense widths (multiples of 128)


def _cdiv(a, b):
    return -(-a // b)


def _device_kind():
    try:
        return jax.devices()[0].device_kind.lower()
    except Exception:
        return ""


def _is_v7x(kind):
    return ("v7" in kind) or ("7x" in kind)


def _default_nsplit():
    # 2 TensorCores per device: v4 / v5p / v7x.  v5e / v6e have 1, where the
    # 'parallel' outer axis is just a serial loop with an extra epilogue.
    kind = _device_kind()
    if _is_v7x(kind) or "v4" in kind or "v5p" in kind:
        return 2
    return 1


def _default_block_rows(num_streamed_inputs):
    # Per-buffer footprint = block_rows * lanes * itemsize, double-buffered per
    # input.  Sizes below fit the 16 MiB (v5e) / 32 MiB (v6e, v7x) scoped-VMEM
    # defaults even for f32 at 512 lanes, so no vmem_limit_bytes override needed.
    v7 = _is_v7x(_device_kind())
    if num_streamed_inputs >= 2:           # SSE kernel: two HBM streams
        return 2048 if v7 else 1024
    return 4096 if v7 else 2048            # log kernel: one HBM stream


# ----------------------------- kernels ------------------------------------- #

def _row_fold(v, acc_rows):
    # Fold (block_rows, L) onto the (acc_rows, L) accumulator: VPU adds only.
    return v.reshape(-1, acc_rows, v.shape[-1]).sum(axis=0)


def _make_logsum_kernel(rows, block_rows, num_blocks, needs_mask, acc_rows):
    def kernel(x_ref, out_ref, acc_ref):
        i, j = pl.program_id(0), pl.program_id(1)

        @pl.when(j == 0)
        def _():
            acc_ref[...] = jnp.zeros_like(acc_ref)

        x = x_ref[...].astype(jnp.float32)   # cast in-kernel, not in wrapper

        if needs_mask:
            row0 = (i * num_blocks + j) * block_rows
            in_range = row0 + block_rows <= rows

            @pl.when(in_range)
            def _():
                acc_ref[...] += _row_fold(jnp.log(x), acc_rows)

            @pl.when(jnp.logical_not(in_range))
            def _():
                rid = row0 + lax.broadcasted_iota(jnp.int32, x.shape, 0)
                xm = jnp.where(rid < rows, x, 1.0)   # neutralise *before* log
                acc_ref[...] += _row_fold(jnp.log(xm), acc_rows)
        else:
            acc_ref[...] += _row_fold(jnp.log(x), acc_rows)

        @pl.when(j == pl.num_programs(1) - 1)
        def _():
            out_ref[...] = jnp.sum(acc_ref[...]).reshape(1, 1, 1)

    return kernel


def _make_sse_kernel(rows, block_rows, num_blocks, needs_mask, acc_rows):
    def kernel(a_ref, b_ref, out_ref, acc_ref):
        i, j = pl.program_id(0), pl.program_id(1)

        @pl.when(j == 0)
        def _():
            acc_ref[...] = jnp.zeros_like(acc_ref)

        d = a_ref[...].astype(jnp.float32) - b_ref[...].astype(jnp.float32)

        if needs_mask:
            row0 = (i * num_blocks + j) * block_rows
            in_range = row0 + block_rows <= rows

            @pl.when(in_range)
            def _():
                acc_ref[...] += _row_fold(d * d, acc_rows)

            @pl.when(jnp.logical_not(in_range))
            def _():
                rid = row0 + lax.broadcasted_iota(jnp.int32, d.shape, 0)
                dm = jnp.where(rid < rows, d, 0.0)   # zero the diff, then square
                acc_ref[...] += _row_fold(dm * dm, acc_rows)
        else:
            acc_ref[...] += _row_fold(d * d, acc_rows)

        @pl.when(j == pl.num_programs(1) - 1)
        def _():
            out_ref[...] = jnp.sum(acc_ref[...]).reshape(1, 1, 1)

    return kernel


# ----------------------------- wrappers ------------------------------------ #

def _to_lane_rows(x, pad_value):
    """Flatten to a lane-dense (rows, L) slab.  The reshape is copy-free when
    the element count is a multiple of 128; only a ragged-lane tensor pays a
    minimal neutral pad (a copy of that tensor alone)."""
    flat = x.reshape(-1)
    n = flat.shape[0]
    for lanes in _LANE_CHOICES:
        if n % lanes == 0:
            return flat.reshape(n // lanes, lanes)
    lanes = _LANE_CHOICES[-1]                       # 128
    padded = _cdiv(n, lanes) * lanes
    flat = jnp.pad(flat, (0, padded - n), constant_values=pad_value)
    return flat.reshape(padded // lanes, lanes)


def _streaming_sum(make_kernel, inputs, *, max_block_rows=None, nsplit=None):
    """Sum-reduce one or more identically shaped (rows, lanes) slabs to a scalar."""
    rows, lanes = inputs[0].shape
    if max_block_rows is None:
        max_block_rows = _default_block_rows(len(inputs))
    if nsplit is None:
        nsplit = _default_nsplit()

    if rows <= max_block_rows:
        # Single block == full array dims: exempt from the (8,128) divisibility
        # rule, no masking, no split.
        block_rows, num_blocks, nsplit = rows, 1, 1
    else:
        block_rows = max_block_rows                  # multiple of 32
        total_blocks = _cdiv(rows, block_rows)
        if total_blocks < 2 * nsplit:
            nsplit = 1
        num_blocks = _cdiv(total_blocks, nsplit)

    needs_mask = (nsplit * num_blocks * block_rows) != rows
    last_block = _cdiv(rows, block_rows) - 1

    acc_rows = block_rows
    for cand in (_ACC_ROWS, 16, 8, 4, 2, 1):
        if block_rows % cand == 0:
            acc_rows = cand
            break

    kernel = make_kernel(rows, block_rows, num_blocks, needs_mask, acc_rows)

    def idx(i, j):
        # Clamp fully-out-of-range logical blocks onto the last valid block;
        # their contribution is zeroed by the in-kernel row mask.
        return (jnp.minimum(i * num_blocks + j, last_block), 0)

    in_spec = pl.BlockSpec((block_rows, lanes), idx)
    partials = pl.pallas_call(
        kernel,
        out_shape=jax.ShapeDtypeStruct((nsplit, 1, 1), jnp.float32),
        grid=(nsplit, num_blocks),
        in_specs=[in_spec] * len(inputs),
        out_specs=pl.BlockSpec((1, 1, 1), lambda i, j: (i, 0, 0)),
        scratch_shapes=[pltpu.VMEM((acc_rows, lanes), jnp.float32)],
        compiler_params=pltpu.CompilerParams(
            dimension_semantics=("parallel", "arbitrary")),
    )(*inputs)
    return jnp.sum(partials)          # add per-core partials in JAX


def _sum_log(likelihood, *, max_block_rows=None, nsplit=None):
    x2 = _to_lane_rows(likelihood, 1.0)            # log(1) == 0: neutral pad
    return _streaming_sum(_make_logsum_kernel, [x2],
                          max_block_rows=max_block_rows, nsplit=nsplit)


def _sum_sq_err(x_hat, target, *, max_block_rows=None, nsplit=None):
    a2 = _to_lane_rows(x_hat, 0.0)                 # identical 0-pad on both
    b2 = _to_lane_rows(target, 0.0)                #   sides -> diff == 0
    return _streaming_sum(_make_sse_kernel, [a2, b2],
                          max_block_rows=max_block_rows, nsplit=nsplit)


def rate_distortion_loss(output, target, lmbda=0.01):
    """JAX/Pallas equivalent of RateDistortionLoss(lmbda, metric='mse',
    return_type='all').forward(output, target).

    output: {'x_hat': (N,C,H,W), 'likelihoods': {name: array, ...}}
    target: (N,C,H,W)
    """
    N, C, H, W = target.shape
    num_pixels = N * H * W

    # sum_t( sum(log(lik_t)) / (-ln2 * num_pixels) )
    log_sum = sum(_sum_log(l) for l in output["likelihoods"].values())
    bpp_loss = log_sum / (-math.log(2) * num_pixels)

    sse = _sum_sq_err(output["x_hat"], target)
    mse_loss = sse / jnp.float32(N * C * H * W)    # nn.MSELoss() default: mean

    loss = lmbda * (255.0 ** 2) * mse_loss + bpp_loss
    return {"bpp_loss": bpp_loss, "mse_loss": mse_loss, "loss": loss}


# ----------------------------- reference (pure JAX) ------------------------- #

def _reference(output, target, lmbda=0.01):
    N, C, H, W = target.shape
    num_pixels = N * H * W
    bpp = sum(jnp.sum(jnp.log(l.astype(jnp.float32))) / (-math.log(2) * num_pixels)
              for l in output["likelihoods"].values())
    mse = jnp.mean((output["x_hat"].astype(jnp.float32)
                    - target.astype(jnp.float32)) ** 2)
    return {"bpp_loss": bpp, "mse_loss": mse,
            "loss": lmbda * 255.0 ** 2 * mse + bpp}


# ----------------------------- main ----------------------------------------- #

if __name__ == "__main__":
    key = jax.random.PRNGKey(0)
    k1, k2, k3, k4, k5, k6, k7 = jax.random.split(key, 7)

    N, C, H, W = 2, 3, 16, 16
    target = jax.random.uniform(k1, (N, C, H, W), dtype=jnp.float32)
    x_hat = jnp.clip(
        target + 0.05 * jax.random.normal(k2, (N, C, H, W), dtype=jnp.float32),
        0.0, 1.0)

    # Latent likelihoods (values in (0, 1]) as produced by an entropy model.
    lik_y = jax.random.uniform(k3, (N, 8, 4, 4), dtype=jnp.float32,
                               minval=0.05, maxval=1.0)
    lik_z = jax.random.uniform(k4, (N, 8, 2, 2), dtype=jnp.float32,
                               minval=0.05, maxval=1.0)

    output = {"x_hat": x_hat, "likelihoods": {"y": lik_y, "z": lik_z}}

    out = rate_distortion_loss(output, target, lmbda=0.01)
    out = jax.tree_util.tree_map(jax.block_until_ready, out)

    ref = _reference(output, target, lmbda=0.01)
    for k in ("bpp_loss", "mse_loss", "loss"):
        assert jnp.allclose(out[k], ref[k], rtol=1e-5, atol=1e-6), (
            k, out[k], ref[k])

    # Extra self-check: exercise the multi-block masked / clamped grid path by
    # forcing tiny blocks and a 2-way split on a row count that does not divide
    # evenly (130 rows of 512 lanes -> 5 blocks of 32 rows, 2-way split = 6
    # logical blocks, one fully out of range -> clamped + fully masked).
    big = jax.random.uniform(k5, (130, 512), dtype=jnp.float32,
                             minval=0.05, maxval=1.0)
    got = jax.block_until_ready(_sum_log(big, max_block_rows=32, nsplit=2))
    want = jnp.sum(jnp.log(big))
    assert jnp.allclose(got, want, rtol=1e-4, atol=1e-2), (got, want)

    a = jax.random.normal(k6, (130, 512), dtype=jnp.float32)
    b = a + 0.1 * jax.random.normal(k7, (130, 512), dtype=jnp.float32)
    got = jax.block_until_ready(_sum_sq_err(a, b, max_block_rows=32, nsplit=2))
    want = jnp.sum((a - b) ** 2)
    assert jnp.allclose(got, want, rtol=1e-4, atol=1e-2), (got, want)

    print("KERNEL_OK")
</pallas_src>

<mosaic_0001>
module attributes {stable_mosaic.version = 11 : i64} {
  func.func @kernel(%arg0: i32, %arg1: i32, %arg2: memref<1x256xf32, #tpu.memory_space<vmem>>, %arg3: memref<1x1x1xf32, #tpu.memory_space<vmem>>, %arg4: memref<1x256xf32, #tpu.memory_space<vmem>>) attributes {dimension_semantics = [#tpu.dimension_semantics<parallel>, #tpu.dimension_semantics<arbitrary>], iteration_bounds = array<i64: 1, 1>, scalar_prefetch = 0 : i64, scratch_operands = 1 : i64, tpu.core_type = #tpu.core_type<tc>, window_params = [{transform_indices = @transform_0, window_bounds = array<i64: 1, 256>}, {transform_indices = @transform_1, window_bounds = array<i64: 1, 1, 1>}]} {
    %c0_i32 = arith.constant 0 : i32
    %0 = arith.cmpi eq, %arg1, %c0_i32 : i32
    %1 = arith.extui %0 : i1 to i32
    %c0_i32_0 = arith.constant 0 : i32
    %2 = arith.cmpi ne, %1, %c0_i32_0 : i32
    scf.if %2 {
      %cst_8 = arith.constant 0.000000e+00 : f32
      %13 = vector.broadcast %cst_8 : f32 to vector<1x256xf32>
      %c0_9 = arith.constant 0 : index
      %c0_10 = arith.constant 0 : index
      %14 = vector.load %arg4[%c0_9, %c0_10] : memref<1x256xf32, #tpu.memory_space<vmem>>, vector<1x256xf32>
      tpu.vector_store %arg4[%c0_9, %c0_10], %13 {strides = array<i32>} : memref<1x256xf32, #tpu.memory_space<vmem>>, vector<1x256xf32>,
    } else {
    }
    %c0 = arith.constant 0 : index
    %c0_1 = arith.constant 0 : index
    %3 = vector.load %arg2[%c0, %c0_1] : memref<1x256xf32, #tpu.memory_space<vmem>>, vector<1x256xf32>
    %c0_2 = arith.constant 0 : index
    %c0_3 = arith.constant 0 : index
    %4 = vector.load %arg4[%c0_2, %c0_3] : memref<1x256xf32, #tpu.memory_space<vmem>>, vector<1x256xf32>
    %5 = math.log %3 : vector<1x256xf32>
    %6 = vector.shape_cast %5 : vector<1x256xf32> to vector<1x1x256xf32>
    %cst = arith.constant dense<0.000000e+00> : vector<1x256xf32>
    %7 = vector.multi_reduction <add>, %6, %cst [0] : vector<1x1x256xf32> to vector<1x256xf32>
    %8 = arith.addf %4, %7 : vector<1x256xf32>
    %c0_4 = arith.constant 0 : index
    %c0_5 = arith.constant 0 : index
    %9 = vector.load %arg4[%c0_4, %c0_5] : memref<1x256xf32, #tpu.memory_space<vmem>>, vector<1x256xf32>
    tpu.vector_store %arg4[%c0_4, %c0_5], %8 {strides = array<i32>} : memref<1x256xf32, #tpu.memory_space<vmem>>, vector<1x256xf32>,
    %c0_i32_6 = arith.constant 0 : i32
    %10 = arith.cmpi eq, %arg1, %c0_i32_6 : i32
    %11 = arith.extui %10 : i1 to i32
    %c0_i32_7 = arith.constant 0 : i32
    %12 = arith.cmpi ne, %11, %c0_i32_7 : i32
    scf.if %12 {
      %c0_8 = arith.constant 0 : index
      %c0_9 = arith.constant 0 : index
      %13 = vector.load %arg4[%c0_8, %c0_9] : memref<1x256xf32, #tpu.memory_space<vmem>>, vector<1x256xf32>
      %14 = vector.shape_cast %13 : vector<1x256xf32> to vector<1x1x256xf32>
      %cst_10 = arith.constant dense<0.000000e+00> : vector<1xf32>
      %15 = vector.multi_reduction <add>, %14, %cst_10 [1, 2] : vector<1x1x256xf32> to vector<1xf32>
      %16 = vector.shape_cast %15 : vector<1xf32> to vector<1x1x1xf32>
      %17 = vector.extract %16[0, 0, 0] : f32 from vector<1x1x1xf32>
      %18 = vector.broadcast %17 : f32 to vector<1x1x1xf32>
      %c0_11 = arith.constant 0 : index
      %c0_12 = arith.constant 0 : index
      %c0_13 = arith.constant 0 : index
      %19 = vector.load %arg3[%c0_11, %c0_12, %c0_13] : memref<1x1x1xf32, #tpu.memory_space<vmem>>, vector<1x1x1xf32>
      tpu.vector_store %arg3[%c0_11, %c0_12, %c0_13], %18 {strides = array<i32>} : memref<1x1x1xf32, #tpu.memory_space<vmem>>, vector<1x1x1xf32>,
    } else {
    }
    return
  }
  func.func @transform_0(%arg0: i32, %arg1: i32) -> (i32, i32) {
    %c1_i32 = arith.constant 1 : i32
    %0 = arith.muli %arg0, %c1_i32 : i32
    %1 = arith.addi %0, %arg1 : i32
    %c0_i32 = arith.constant 0 : i32
    %2 = arith.minsi %1, %c0_i32 : i32
    %c0_i32_0 = arith.constant 0 : i32
    %c0_i32_1 = arith.constant 0 : i32
    return %2, %c0_i32_0 : i32, i32
  }
  func.func @transform_1(%arg0: i32, %arg1: i32) -> (i32, i32, i32) {
    %c0_i32 = arith.constant 0 : i32
    %c0_i32_0 = arith.constant 0 : i32
    %c0_i32_1 = arith.constant 0 : i32
    return %arg0, %c0_i32, %c0_i32_0 : i32, i32, i32
  }
}

</mosaic_0001>

<llo_original>
// kernel: tpu_custom_call.1
$region0: #{tpu_custom_call.1}
  #allocation0 [shape = 'u32[]', space=smem, size = 0x4, offset = 0x4, fixed_abs, tag = 'smem constant byte address 0x4 - core index']
  #allocation1 [shape = 'u32[144,128]{1,0:T(1,128)}', space=vmem, size = 0x12000, scoped, tag = 'internal scratch']
  #allocation2 [shape = 'f32[1,256]{1,0:T(1,128)}', space=vmem, size = 0x400, scoped, tag = 'scratch operand']
  %s0 = inlined_call_operand.hbm [shape: f32[1,256], index: 0, kind: input, shape index: {}]
  %s1 = inlined_call_operand.hbm [shape: f32[1,1,1], index: 1, kind: output, shape index: {}]
  %s2 = sld [smem:[#allocation0]]
  $region26: #{tpu_custom_call.1} parent=0
    _
  %s4 = ssub.s32 1, %s2
  %s5 = scalar_select 0, %s4, %s2
  $region1: #{tpu_custom_call.1} parent=0
    #allocation3 [shape = 'u8[1024]{0}', space=vmem, size = 0x400, scoped, tag = 'input window, operand 0, single buffered']
    #allocation4 [shape = 's32[1]{0}', space=sflag, size = 0x4, scoped, tag = 'scoped memory for tpu_custom_call.1']
    #allocation5 [shape = 's32[1]{0}', space=sflag, size = 0x4, scoped, tag = 'scoped memory for tpu_custom_call.1']
    #allocation6 [shape = 'u8[512]{0}', space=vmem, size = 0x400, scoped, tag = 'output window, operand 0, single buffered']
    %6 = vsyncpa [#allocation4], 0
    %7 = vsyncpa [#allocation5], 0
    // Predicated region
    $region2: #{tpu_custom_call.1} parent=1 // pred_check
      _
    $region3: #{tpu_custom_call.1} parent=1 // pred_check_branch
      %9 = sbr.rel (0) target = $region5
    $region4: #{tpu_custom_call.1} parent=1 // pred_region
      %s10 = sadd.s32 0, 0
      %p11 = scmp.lt.s32.totalorder %s10, 0
      %s12 = scalar_select %p11, %s10, 0
      %s14 = ssub.s32 32, 32
      %15 = vsyncadd [#allocation4], %s14
      %s16 = smul.addr %s12, 2
      %s17 = smul.addr %s16, 16
      %s18 = scalar_lea.hbm %s0, %s17
      %s20 = sshll.u32 [#allocation3], 4
      %s21 = int_to_ptr.vmem [resolvable:$true] %s20
      %23 = dma.hbm_to_vmem [thread:$0]  %s18, 32, %s21, [#allocation4]
    $region5: #{tpu_custom_call.1} parent=1 // pred_fallthru
      _
    // Predicated region
    $region6: #{tpu_custom_call.1} parent=1 // pred_check
      _
    $region7: #{tpu_custom_call.1} parent=1 // pred_check_branch
      %25 = sbr.rel (0) target = $region9
    $region8: #{tpu_custom_call.1} parent=1 // pred_region
      %26 = dma.done [#allocation4], 32
    $region9: #{tpu_custom_call.1} parent=1 // pred_fallthru
      _
    %s27 = sadd.s32 0, 0
    %p28 = scmp.lt.s32.totalorder %s27, 0
    %s29 = scalar_select %p28, %s27, 0
    %p30 = scmp.eq.s32.totalorder 0, 0
    // Predicated region
    $region10: #{tpu_custom_call.1} parent=1 // pred_check
      %p31 = pneg %p30
    $region11: #{tpu_custom_call.1} parent=1 // pred_check_branch
      %33 = sbr.rel (%p31) target = $region13
    $region12: #{tpu_custom_call.1} parent=1 // pred_region
      %v34 = vlaneseq
      %vm35 = vcmp.ge.s32.totalorder %v34, 0
      %vm36 = vcmp.lt.s32.totalorder %v34, 256
      %vm37 = vmand %vm35, %vm36
      %38 = vst.msk [vmem:[#allocation2] sm:$0x3] %vm37, 0.0
    $region13: #{tpu_custom_call.1} parent=1 // pred_fallthru
      _
    %v39 = vld [vmem:[#allocation3] sm:$0x3]
    %v40 = vld [vmem:[#allocation2] sm:$0x3]
    %v41 = vlog2.pop %v39
    %v42 = vmul.f32 %v41, 0.6931472
    %v43 = vadd.f32 %v42, 0.0
    %v44 = vadd.f32 %v40, %v43
    %v45 = vlaneseq
    %vm46 = vcmp.ge.s32.totalorder %v45, 0
    %vm47 = vcmp.lt.s32.totalorder %v45, 256
    %vm48 = vmand %vm46, %vm47
    %49 = vst.msk [vmem:[#allocation2] sm:$0x3] %vm48, %v44
    // Predicated region
    $region14: #{tpu_custom_call.1} parent=1 // pred_check
      %p50 = pneg %p30
    $region15: #{tpu_custom_call.1} parent=1 // pred_check_branch
      %52 = sbr.rel (%p50) target = $region17
    $region16: #{tpu_custom_call.1} parent=1 // pred_region
      %v53 = vld [vmem:[#allocation2] sm:$0x3]
      %v55 = vlaneseq
      %v56 = vshrl.u32 %v55, 7
      %v57 = vsub.s32 0, %v56
      %v58 = vrot.slane %v53, %v57
      %v59 = vlaneseq
      %v60 = vshrl.u32 %v59, 7
      %v61 = vsub.s32 1, %v60
      %v62 = vrot.slane %v53, %v61
      %vm65 = vcmask 1040384
      %v66 = vsel %vm65, %v58, 0.0
      %v67 = vsel %vm65, %v62, 0.0
      %v68 = vadd.f32 %v66, %v67
      %69 = vadd.xlane.f32.xlu0 %v68
      %v70 = vpop.xlane.xlu0 %69
      %v71 = vrot.slane %v70, 4
      %v72 = vadd.f32 %v70, %v71
      %v73 = vrot.slane %v72, 2
      %v74 = vadd.f32 %v72, %v73
      %v75 = vrot.slane %v74, 1
      %v76 = vadd.f32 %v74, %v75
      %s77 = vtos %v76
      %v78 = vstv %s77
      %vm79 = vcmask 0
      %80 = vst.msk [vmem:[#allocation6] sm:$0x1] %vm79, %v78
    $region17: #{tpu_custom_call.1} parent=1 // pred_fallthru
      _
    // Predicated region
    $region18: #{tpu_custom_call.1} parent=1 // pred_check
      _
    $region19: #{tpu_custom_call.1} parent=1 // pred_check_branch
      %82 = sbr.rel (0) target = $region21
    $region20: #{tpu_custom_call.1} parent=1 // pred_region
      %s84 = ssub.s32 16, 16
      %85 = vsyncadd [#allocation5], %s84
      %s87 = sshll.u32 [#allocation6], 4
      %s88 = int_to_ptr.vmem [resolvable:$true] %s87
      %90 = dma.vmem_to_hbm [thread:$0]  %s88, 16, %s1, [#allocation5]
    $region21: #{tpu_custom_call.1} parent=1 // pred_fallthru
      _
    // Predicated region
    $region22: #{tpu_custom_call.1} parent=1 // pred_check
      _
    $region23: #{tpu_custom_call.1} parent=1 // pred_check_branch
      %92 = sbr.rel (0) target = $region25
    $region24: #{tpu_custom_call.1} parent=1 // pred_region
      %93 = dma.done [#allocation5], 16
    $region25: #{tpu_custom_call.1} parent=1 // pred_fallthru
      _
    %94 = vsyncpa [#allocation4], 1
    %95 = vsyncpa [#allocation5], 1

</llo_original>
